<compile_context>
chip_gen: v7x
topology: tpu7x:2x2x1
jax: 0.10.0
libtpu: 0.0.40
codegen_flags: <defaults>
</compile_context>

<pallas_src>
import functools

import jax
import jax.numpy as jnp
from jax.experimental import pallas as pl
from jax.experimental.pallas import tpu as pltpu

_LANE = 128        # lane width: last dims padded to a multiple of this
_SUBLANE = 8       # sublane width: row tiles padded to a multiple of this
_MAX_TILE_N = 256  # max row tile = full MXU height on v6e/v7x


def _round_up(x, m):
    return (x + m - 1) // m * m


def _hash_u32(x):
    """lowbias32-style mixer on uint32 (pure jnp: works on TPU and in interpret mode)."""
    x = x ^ (x >> 16)
    x = x * jnp.uint32(0x7FEB352D)
    x = x ^ (x >> 15)
    x = x * jnp.uint32(0x846CA68B)
    x = x ^ (x >> 16)
    return x


def _keep_mask_half(shape, seed_u32, tile_u32, layer):
    """Boolean keep-mask with P(keep)=0.5, distinct per (seed, tile, layer, element)."""
    rows = jax.lax.broadcasted_iota(jnp.int32, shape, 0).astype(jnp.uint32)
    cols = jax.lax.broadcasted_iota(jnp.int32, shape, 1).astype(jnp.uint32)
    idx = rows * jnp.uint32(shape[1]) + cols
    salt = (seed_u32
            + tile_u32 * jnp.uint32(0x9E3779B9)
            + jnp.uint32(layer + 1) * jnp.uint32(0x85EBCA6B))
    bits = _hash_u32(idx + salt)
    return bits < jnp.uint32(0x80000000)   # full-word threshold compare, p=0.5


def mlp_kernel(seed_ref,                                   # scalar prefetch (SMEM)
               x_ref, w1_ref, b1_ref, w2_ref, b2_ref, w3_ref, b3_ref,
               o_ref):
    seed = seed_ref[0].astype(jnp.uint32)
    tile = pl.program_id(0).astype(jnp.uint32)

    # fc1 + ReLU + dropout(0.5)   (the 2x keep-scale is pre-folded into w2)
    h = jnp.dot(x_ref[...], w1_ref[...], preferred_element_type=jnp.float32) + b1_ref[...]
    h = jnp.maximum(h, 0.0)
    h = jnp.where(_keep_mask_half(h.shape, seed, tile, 0), h, 0.0)

    # fc2 + ReLU + dropout(0.5)   (the 2x keep-scale is pre-folded into w3)
    h = jnp.dot(h.astype(w2_ref.dtype), w2_ref[...], preferred_element_type=jnp.float32) + b2_ref[...]
    h = jnp.maximum(h, 0.0)
    h = jnp.where(_keep_mask_half(h.shape, seed, tile, 1), h, 0.0)

    # fc3 + sigmoid
    out = jnp.dot(h.astype(w3_ref.dtype), w3_ref[...], preferred_element_type=jnp.float32) + b3_ref[...]
    o_ref[...] = jax.nn.sigmoid(out).astype(o_ref.dtype)


def _pad2(a, rows, cols):
    pr, pc = rows - a.shape[0], cols - a.shape[1]
    if pr == 0 and pc == 0:
        return a
    return jnp.pad(a, ((0, pr), (0, pc)))


def _pick_row_tiling(n):
    """Row tile + padded batch: small batches use one sublane-aligned tile."""
    n8 = _round_up(max(n, 1), _SUBLANE)
    if n8 <= _MAX_TILE_N:
        return n8, n8
    return _MAX_TILE_N, _round_up(n8, _MAX_TILE_N)


@functools.partial(jax.jit, static_argnames=("compute_dtype",))
def mlp_forward(x, params, seed, *, compute_dtype=jnp.bfloat16):
    """x: [N, in_channels] f32.  params: dict (weights stored [fan_in, fan_out]).  seed: int32[1]."""
    w1, b1 = params["w1"], params["b1"]
    w2, b2 = params["w2"], params["b2"]
    w3, b3 = params["w3"], params["b3"]

    n, c_in = x.shape
    hid, c_out = w1.shape[1], w3.shape[1]

    in_p = _round_up(c_in, _LANE)
    hid_p = _round_up(hid, _LANE)
    out_p = _round_up(c_out, _LANE)
    tile_n, n_p = _pick_row_tiling(n)

    # Lane-pad to multiples of 128; fold the dropout 2x rescale into the next layer's
    # weights; cast matmul operands to bf16 (f32 accumulation happens in the kernel).
    x_p = _pad2(x, n_p, in_p).astype(compute_dtype)
    w1_p = _pad2(w1, in_p, hid_p).astype(compute_dtype)
    w2_p = (_pad2(w2, hid_p, hid_p) * 2.0).astype(compute_dtype)
    w3_p = (_pad2(w3, hid_p, out_p) * 2.0).astype(compute_dtype)
    b1_p = _pad2(b1, 1, hid_p).astype(jnp.float32)
    b2_p = _pad2(b2, 1, hid_p).astype(jnp.float32)
    b3_p = _pad2(b3, 1, out_p).astype(jnp.float32)

    resident = lambda i, s: (0, 0)      # weights/biases stay in VMEM across the grid

    out = pl.pallas_call(
        mlp_kernel,
        out_shape=jax.ShapeDtypeStruct((n_p, out_p), jnp.float32),
        grid_spec=pltpu.PrefetchScalarGridSpec(
            num_scalar_prefetch=1,
            grid=(n_p // tile_n,),
            in_specs=[
                pl.BlockSpec((tile_n, in_p), lambda i, s: (i, 0)),   # x: pipelined per tile
                pl.BlockSpec((in_p, hid_p), resident),               # w1
                pl.BlockSpec((1, hid_p), resident),                  # b1
                pl.BlockSpec((hid_p, hid_p), resident),              # w2 (x2 folded)
                pl.BlockSpec((1, hid_p), resident),                  # b2
                pl.BlockSpec((hid_p, out_p), resident),              # w3 (x2 folded)
                pl.BlockSpec((1, out_p), resident),                  # b3
            ],
            out_specs=pl.BlockSpec((tile_n, out_p), lambda i, s: (i, 0)),
        ),
        compiler_params=pltpu.CompilerParams(
            dimension_semantics=("parallel",),   # megacore-shard the batch axis (v7x)
        ),
    )(seed, x_p, w1_p, b1_p, w2_p, b2_p, w3_p, b3_p)

    return out[:n, :c_out]


def init_params(key, in_channels, hidden_channels, class_channels):
    """nn.Linear-style init (uniform +-1/sqrt(fan_in)); weights stored [fan_in, fan_out]."""
    def linear(k, fan_in, fan_out):
        kw, kb = jax.random.split(k)
        bound = 1.0 / jnp.sqrt(fan_in)
        w = jax.random.uniform(kw, (fan_in, fan_out), jnp.float32, -bound, bound)
        b = jax.random.uniform(kb, (1, fan_out), jnp.float32, -bound, bound)
        return w, b

    k1, k2, k3 = jax.random.split(key, 3)
    w1, b1 = linear(k1, in_channels, hidden_channels)
    w2, b2 = linear(k2, hidden_channels, hidden_channels)
    w3, b3 = linear(k3, hidden_channels, class_channels)
    return {"w1": w1, "b1": b1, "w2": w2, "b2": b2, "w3": w3, "b3": b3}


if __name__ == "__main__":
    in_channels, hidden_channels, class_channels = 32, 32, 8
    batch = 8

    key = jax.random.PRNGKey(0)
    kx, kp = jax.random.split(key)

    x = jax.random.normal(kx, (batch, in_channels), jnp.float32)
    params = init_params(kp, in_channels, hidden_channels, class_channels)
    seed = jnp.array([1234], dtype=jnp.int32)

    out = mlp_forward(x, params, seed)
    out = jax.block_until_ready(out)

    assert out.shape == (batch, class_channels)
    assert bool(jnp.all(jnp.isfinite(out)))
    assert bool(jnp.all((out >= 0.0) & (out <= 1.0)))   # sigmoid range
    print("KERNEL_OK")
</pallas_src>

<mosaic_0001>
module attributes {stable_mosaic.version = 11 : i64} {
  func.func @mlp_kernel(%arg0: i32, %arg1: memref<1xi32, #tpu.memory_space<smem>>, %arg2: memref<8x128xbf16, #tpu.memory_space<vmem>>, %arg3: memref<128x128xbf16, #tpu.memory_space<vmem>>, %arg4: memref<1x128xf32, #tpu.memory_space<vmem>>, %arg5: memref<128x128xbf16, #tpu.memory_space<vmem>>, %arg6: memref<1x128xf32, #tpu.memory_space<vmem>>, %arg7: memref<128x128xbf16, #tpu.memory_space<vmem>>, %arg8: memref<1x128xf32, #tpu.memory_space<vmem>>, %arg9: memref<8x128xf32, #tpu.memory_space<vmem>>) attributes {dimension_semantics = [#tpu.dimension_semantics<parallel>], iteration_bounds = array<i64: 1>, scalar_prefetch = 1 : i64, scratch_operands = 0 : i64, tpu.core_type = #tpu.core_type<tc>, window_params = [{transform_indices = @transform_0, window_bounds = array<i64: 8, 128>}, {pipeline_mode = #tpu.pipeline_mode<synchronous>, transform_indices = @transform_1, window_bounds = array<i64: 128, 128>}, {pipeline_mode = #tpu.pipeline_mode<synchronous>, transform_indices = @transform_2, window_bounds = array<i64: 1, 128>}, {pipeline_mode = #tpu.pipeline_mode<synchronous>, transform_indices = @transform_3, window_bounds = array<i64: 128, 128>}, {pipeline_mode = #tpu.pipeline_mode<synchronous>, transform_indices = @transform_4, window_bounds = array<i64: 1, 128>}, {pipeline_mode = #tpu.pipeline_mode<synchronous>, transform_indices = @transform_5, window_bounds = array<i64: 128, 128>}, {pipeline_mode = #tpu.pipeline_mode<synchronous>, transform_indices = @transform_6, window_bounds = array<i64: 1, 128>}, {transform_indices = @transform_7, window_bounds = array<i64: 8, 128>}]} {
    %c0 = arith.constant 0 : index
    %0 = memref.load %arg1[%c0] : memref<1xi32, #tpu.memory_space<smem>>
    %c0_0 = arith.constant 0 : index
    %c0_1 = arith.constant 0 : index
    %1 = vector.load %arg2[%c0_0, %c0_1] : memref<8x128xbf16, #tpu.memory_space<vmem>>, vector<8x128xbf16>
    %c0_2 = arith.constant 0 : index
    %c0_3 = arith.constant 0 : index
    %2 = vector.load %arg3[%c0_2, %c0_3] : memref<128x128xbf16, #tpu.memory_space<vmem>>, vector<128x128xbf16>
    %cst = arith.constant dense<0.000000e+00> : vector<8x128xf32>
    %3 = tpu.matmul %1, %2, %cst {dimension_numbers = #tpu.dot_dimension_numbers<[1], [0], [0], [1], [0, 0, 1, 1], [], []>} : vector<8x128xbf16>, vector<128x128xbf16>, vector<8x128xf32> -> vector<8x128xf32>
    %c0_4 = arith.constant 0 : index
    %c0_5 = arith.constant 0 : index
    %4 = vector.load %arg4[%c0_4, %c0_5] : memref<1x128xf32, #tpu.memory_space<vmem>>, vector<1x128xf32>
    %5 = vector.broadcast %4 : vector<1x128xf32> to vector<8x128xf32>
    %6 = arith.addf %3, %5 : vector<8x128xf32>
    %cst_6 = arith.constant 0.000000e+00 : f32
    %7 = vector.broadcast %cst_6 : f32 to vector<8x128xf32>
    %8 = arith.maximumf %6, %7 : vector<8x128xf32>
    %9 = tpu.iota {dimensions = array<i32: 0>} : vector<8x128xi32>
    %10 = tpu.iota {dimensions = array<i32: 1>} : vector<8x128xi32>
    %c128_i32 = arith.constant 128 : i32
    %11 = vector.broadcast %c128_i32 : i32 to vector<8x128xi32>
    %12 = arith.muli %9, %11 : vector<8x128xi32>
    %13 = arith.addi %12, %10 : vector<8x128xi32>
    %c-1640531527_i32 = arith.constant -1640531527 : i32
    %14 = arith.muli %arg0, %c-1640531527_i32 : i32
    %15 = arith.addi %0, %14 : i32
    %c1_i32 = arith.constant 1 : i32
    %c-2048144789_i32 = arith.constant -2048144789 : i32
    %16 = arith.muli %c1_i32, %c-2048144789_i32 : i32
    %17 = arith.addi %15, %16 : i32
    %18 = vector.broadcast %17 : i32 to vector<8x128xi32>
    %19 = arith.addi %13, %18 : vector<8x128xi32>
    %c16_i32 = arith.constant 16 : i32
    %20 = vector.broadcast %c16_i32 : i32 to vector<8x128xi32>
    %21 = arith.shrui %19, %20 : vector<8x128xi32>
    %22 = arith.xori %19, %21 : vector<8x128xi32>
    %c2146121005_i32 = arith.constant 2146121005 : i32
    %23 = vector.broadcast %c2146121005_i32 : i32 to vector<8x128xi32>
    %24 = arith.muli %22, %23 : vector<8x128xi32>
    %c15_i32 = arith.constant 15 : i32
    %25 = vector.broadcast %c15_i32 : i32 to vector<8x128xi32>
    %26 = arith.shrui %24, %25 : vector<8x128xi32>
    %27 = arith.xori %24, %26 : vector<8x128xi32>
    %c-2073254261_i32 = arith.constant -2073254261 : i32
    %28 = vector.broadcast %c-2073254261_i32 : i32 to vector<8x128xi32>
    %29 = arith.muli %27, %28 : vector<8x128xi32>
    %c16_i32_7 = arith.constant 16 : i32
    %30 = vector.broadcast %c16_i32_7 : i32 to vector<8x128xi32>
    %31 = arith.shrui %29, %30 : vector<8x128xi32>
    %32 = arith.xori %29, %31 : vector<8x128xi32>
    %c-2147483648_i32 = arith.constant -2147483648 : i32
    %33 = vector.broadcast %c-2147483648_i32 : i32 to vector<8x128xi32>
    %34 = arith.cmpi ult, %32, %33 : vector<8x128xi32>
    %cst_8 = arith.constant 0.000000e+00 : f32
    %35 = vector.broadcast %cst_8 : f32 to vector<8x128xf32>
    %36 = arith.select %34, %8, %35 : vector<8x128xi1>, vector<8x128xf32>
    %37 = arith.truncf %36 : vector<8x128xf32> to vector<8x128xbf16>
    %c0_9 = arith.constant 0 : index
    %c0_10 = arith.constant 0 : index
    %38 = vector.load %arg5[%c0_9, %c0_10] : memref<128x128xbf16, #tpu.memory_space<vmem>>, vector<128x128xbf16>
    %cst_11 = arith.constant dense<0.000000e+00> : vector<8x128xf32>
    %39 = tpu.matmul %37, %38, %cst_11 {dimension_numbers = #tpu.dot_dimension_numbers<[1], [0], [0], [1], [0, 0, 1, 1], [], []>} : vector<8x128xbf16>, vector<128x128xbf16>, vector<8x128xf32> -> vector<8x128xf32>
    %c0_12 = arith.constant 0 : index
    %c0_13 = arith.constant 0 : index
    %40 = vector.load %arg6[%c0_12, %c0_13] : memref<1x128xf32, #tpu.memory_space<vmem>>, vector<1x128xf32>
    %41 = vector.broadcast %40 : vector<1x128xf32> to vector<8x128xf32>
    %42 = arith.addf %39, %41 : vector<8x128xf32>
    %cst_14 = arith.constant 0.000000e+00 : f32
    %43 = vector.broadcast %cst_14 : f32 to vector<8x128xf32>
    %44 = arith.maximumf %42, %43 : vector<8x128xf32>
    %45 = tpu.iota {dimensions = array<i32: 0>} : vector<8x128xi32>
    %46 = tpu.iota {dimensions = array<i32: 1>} : vector<8x128xi32>
    %c128_i32_15 = arith.constant 128 : i32
    %47 = vector.broadcast %c128_i32_15 : i32 to vector<8x128xi32>
    %48 = arith.muli %45, %47 : vector<8x128xi32>
    %49 = arith.addi %48, %46 : vector<8x128xi32>
    %c-1640531527_i32_16 = arith.constant -1640531527 : i32
    %50 = arith.muli %arg0, %c-1640531527_i32_16 : i32
    %51 = arith.addi %0, %50 : i32
    %c2_i32 = arith.constant 2 : i32
    %c-2048144789_i32_17 = arith.constant -2048144789 : i32
    %52 = arith.muli %c2_i32, %c-2048144789_i32_17 : i32
    %53 = arith.addi %51, %52 : i32
    %54 = vector.broadcast %53 : i32 to vector<8x128xi32>
    %55 = arith.addi %49, %54 : vector<8x128xi32>
    %c16_i32_18 = arith.constant 16 : i32
    %56 = vector.broadcast %c16_i32_18 : i32 to vector<8x128xi32>
    %57 = arith.shrui %55, %56 : vector<8x128xi32>
    %58 = arith.xori %55, %57 : vector<8x128xi32>
    %c2146121005_i32_19 = arith.constant 2146121005 : i32
    %59 = vector.broadcast %c2146121005_i32_19 : i32 to vector<8x128xi32>
    %60 = arith.muli %58, %59 : vector<8x128xi32>
    %c15_i32_20 = arith.constant 15 : i32
    %61 = vector.broadcast %c15_i32_20 : i32 to vector<8x128xi32>
    %62 = arith.shrui %60, %61 : vector<8x128xi32>
    %63 = arith.xori %60, %62 : vector<8x128xi32>
    %c-2073254261_i32_21 = arith.constant -2073254261 : i32
    %64 = vector.broadcast %c-2073254261_i32_21 : i32 to vector<8x128xi32>
    %65 = arith.muli %63, %64 : vector<8x128xi32>
    %c16_i32_22 = arith.constant 16 : i32
    %66 = vector.broadcast %c16_i32_22 : i32 to vector<8x128xi32>
    %67 = arith.shrui %65, %66 : vector<8x128xi32>
    %68 = arith.xori %65, %67 : vector<8x128xi32>
    %c-2147483648_i32_23 = arith.constant -2147483648 : i32
    %69 = vector.broadcast %c-2147483648_i32_23 : i32 to vector<8x128xi32>
    %70 = arith.cmpi ult, %68, %69 : vector<8x128xi32>
    %cst_24 = arith.constant 0.000000e+00 : f32
    %71 = vector.broadcast %cst_24 : f32 to vector<8x128xf32>
    %72 = arith.select %70, %44, %71 : vector<8x128xi1>, vector<8x128xf32>
    %73 = arith.truncf %72 : vector<8x128xf32> to vector<8x128xbf16>
    %c0_25 = arith.constant 0 : index
    %c0_26 = arith.constant 0 : index
    %74 = vector.load %arg7[%c0_25, %c0_26] : memref<128x128xbf16, #tpu.memory_space<vmem>>, vector<128x128xbf16>
    %cst_27 = arith.constant dense<0.000000e+00> : vector<8x128xf32>
    %75 = tpu.matmul %73, %74, %cst_27 {dimension_numbers = #tpu.dot_dimension_numbers<[1], [0], [0], [1], [0, 0, 1, 1], [], []>} : vector<8x128xbf16>, vector<128x128xbf16>, vector<8x128xf32> -> vector<8x128xf32>
    %c0_28 = arith.constant 0 : index
    %c0_29 = arith.constant 0 : index
    %76 = vector.load %arg8[%c0_28, %c0_29] : memref<1x128xf32, #tpu.memory_space<vmem>>, vector<1x128xf32>
    %77 = vector.broadcast %76 : vector<1x128xf32> to vector<8x128xf32>
    %78 = arith.addf %75, %77 : vector<8x128xf32>
    %79 = arith.negf %78 : vector<8x128xf32>
    %80 = math.exp %79 : vector<8x128xf32>
    %cst_30 = arith.constant 1.000000e+00 : f32
    %81 = vector.broadcast %cst_30 : f32 to vector<8x128xf32>
    %82 = arith.addf %81, %80 : vector<8x128xf32>
    %83 = arith.divf %81, %82 : vector<8x128xf32>
    %c0_31 = arith.constant 0 : index
    %c0_32 = arith.constant 0 : index
    %84 = vector.load %arg9[%c0_31, %c0_32] : memref<8x128xf32, #tpu.memory_space<vmem>>, vector<8x128xf32>
    tpu.vector_store %arg9[%c0_31, %c0_32], %83 {strides = array<i32>} : memref<8x128xf32, #tpu.memory_space<vmem>>, vector<8x128xf32>,
    return
  }
  func.func @transform_0(%arg0: i32, %arg1: memref<1xi32, #tpu.memory_space<smem>>) -> (i32, i32) {
    %c0_i32 = arith.constant 0 : i32
    %c0_i32_0 = arith.constant 0 : i32
    return %arg0, %c0_i32 : i32, i32
  }
  func.func @transform_1(%arg0: i32, %arg1: memref<1xi32, #tpu.memory_space<smem>>) -> (i32, i32) {
    %c0_i32 = arith.constant 0 : i32
    %c0_i32_0 = arith.constant 0 : i32
    %c0_i32_1 = arith.constant 0 : i32
    return %c0_i32, %c0_i32_0 : i32, i32
  }
  func.func @transform_2(%arg0: i32, %arg1: memref<1xi32, #tpu.memory_space<smem>>) -> (i32, i32) {
    %c0_i32 = arith.constant 0 : i32
    %c0_i32_0 = arith.constant 0 : i32
    %c0_i32_1 = arith.constant 0 : i32
    return %c0_i32, %c0_i32_0 : i32, i32
  }
  func.func @transform_3(%arg0: i32, %arg1: memref<1xi32, #tpu.memory_space<smem>>) -> (i32, i32) {
    %c0_i32 = arith.constant 0 : i32
    %c0_i32_0 = arith.constant 0 : i32
    %c0_i32_1 = arith.constant 0 : i32
    return %c0_i32, %c0_i32_0 : i32, i32
  }
  func.func @transform_4(%arg0: i32, %arg1: memref<1xi32, #tpu.memory_space<smem>>) -> (i32, i32) {
    %c0_i32 = arith.constant 0 : i32
    %c0_i32_0 = arith.constant 0 : i32
    %c0_i32_1 = arith.constant 0 : i32
    return %c0_i32, %c0_i32_0 : i32, i32
  }
  func.func @transform_5(%arg0: i32, %arg1: memref<1xi32, #tpu.memory_space<smem>>) -> (i32, i32) {
    %c0_i32 = arith.constant 0 : i32
    %c0_i32_0 = arith.constant 0 : i32
    %c0_i32_1 = arith.constant 0 : i32
    return %c0_i32, %c0_i32_0 : i32, i32
  }
  func.func @transform_6(%arg0: i32, %arg1: memref<1xi32, #tpu.memory_space<smem>>) -> (i32, i32) {
    %c0_i32 = arith.constant 0 : i32
    %c0_i32_0 = arith.constant 0 : i32
    %c0_i32_1 = arith.constant 0 : i32
    return %c0_i32, %c0_i32_0 : i32, i32
  }
  func.func @transform_7(%arg0: i32, %arg1: memref<1xi32, #tpu.memory_space<smem>>) -> (i32, i32) {
    %c0_i32 = arith.constant 0 : i32
    %c0_i32_0 = arith.constant 0 : i32
    return %arg0, %c0_i32 : i32, i32
  }
}

</mosaic_0001>

<llo_original>
// kernel: mlp_forward.1
$region0: #{mlp_forward.1}
  #allocation0 [shape = 'u32[]', space=smem, size = 0x4, offset = 0x4, fixed_abs, tag = 'smem constant byte address 0x4 - core index']
  #allocation1 [shape = 'u32[144,128]{1,0:T(1,128)}', space=vmem, size = 0x12000, scoped, tag = 'internal scratch']
  #allocation2 [shape = 's32[1]{0}', space=sflag, size = 0x4, scoped, tag = 'scoped memory for mlp_forward.1']
  #allocation3 [shape = 's32[1]{0:T(128)S(6)}', space=smem, size = 0x200, scoped, tag = 'prefetched SMEM operand 0']
  %s0 = inlined_call_operand.<no memory space> [shape: s32[1], index: 0, kind: input, shape index: {}]
  %s1 = inlined_call_operand.vmem [shape: bf16[8,128], index: 1, kind: input, shape index: {}]
  %s2 = inlined_call_operand.vmem [shape: bf16[128,128], index: 2, kind: input, shape index: {}]
  %s3 = inlined_call_operand.vmem [shape: f32[1,128], index: 3, kind: input, shape index: {}]
  %s4 = inlined_call_operand.vmem [shape: bf16[128,128], index: 4, kind: input, shape index: {}]
  %s5 = inlined_call_operand.vmem [shape: f32[1,128], index: 5, kind: input, shape index: {}]
  %s6 = inlined_call_operand.vmem [shape: bf16[128,128], index: 6, kind: input, shape index: {}]
  %s7 = inlined_call_operand.vmem [shape: f32[1,128], index: 7, kind: input, shape index: {}]
  %s8 = inlined_call_operand.hbm [shape: f32[8,128], index: 8, kind: output, shape index: {}]
  %s9 = sld [smem:[#allocation0]]
  $region38: #{mlp_forward.1} parent=0
    _
  %s11 = ssub.s32 1, %s9
  %s12 = scalar_select 0, %s11, %s9
  %13 = sst [smem:[#allocation3]] %s0
  $region1: #{mlp_forward.1} parent=0
    #allocation4 [shape = 'u8[4096]{0}', space=vmem, size = 0x1000, scoped, tag = 'output window, operand 0, single buffered']
    #allocation5 [shape = 's32[1]{0}', space=sflag, size = 0x4, scoped, tag = 'scoped memory for mlp_forward.1']
    %14 = vsyncpa [#allocation5], 0
    // Predicated region
    $region2: #{mlp_forward.1} parent=1 // pred_check
      _
    $region3: #{mlp_forward.1} parent=1 // pred_check_branch
      %16 = sbr.rel (0) target = $region5
    $region4: #{mlp_forward.1} parent=1 // pred_region
      _
    $region5: #{mlp_forward.1} parent=1 // pred_fallthru
      _
    // Predicated region
    $region6: #{mlp_forward.1} parent=1 // pred_check
      _
    $region7: #{mlp_forward.1} parent=1 // pred_check_branch
      %18 = sbr.rel (0) target = $region9
    $region8: #{mlp_forward.1} parent=1 // pred_region
      _
    $region9: #{mlp_forward.1} parent=1 // pred_fallthru
      _
    // Predicated region
    $region10: #{mlp_forward.1} parent=1 // pred_check
      _
    $region11: #{mlp_forward.1} parent=1 // pred_check_branch
      %20 = sbr.rel (0) target = $region13
    $region12: #{mlp_forward.1} parent=1 // pred_region
      _
    $region13: #{mlp_forward.1} parent=1 // pred_fallthru
      _
    // Predicated region
    $region14: #{mlp_forward.1} parent=1 // pred_check
      _
    $region15: #{mlp_forward.1} parent=1 // pred_check_branch
      %22 = sbr.rel (0) target = $region17
    $region16: #{mlp_forward.1} parent=1 // pred_region
      _
    $region17: #{mlp_forward.1} parent=1 // pred_fallthru
      _
    // Predicated region
    $region18: #{mlp_forward.1} parent=1 // pred_check
      _
    $region19: #{mlp_forward.1} parent=1 // pred_check_branch
      %24 = sbr.rel (0) target = $region21
    $region20: #{mlp_forward.1} parent=1 // pred_region
      _
    $region21: #{mlp_forward.1} parent=1 // pred_fallthru
      _
    // Predicated region
    $region22: #{mlp_forward.1} parent=1 // pred_check
      _
    $region23: #{mlp_forward.1} parent=1 // pred_check_branch
      %26 = sbr.rel (0) target = $region25
    $region24: #{mlp_forward.1} parent=1 // pred_region
      _
    $region25: #{mlp_forward.1} parent=1 // pred_fallthru
      _
    // Predicated region
    $region26: #{mlp_forward.1} parent=1 // pred_check
      _
    $region27: #{mlp_forward.1} parent=1 // pred_check_branch
      %28 = sbr.rel (0) target = $region29
    $region28: #{mlp_forward.1} parent=1 // pred_region
      _
    $region29: #{mlp_forward.1} parent=1 // pred_fallthru
      _
    %s30 = sld [smem:[#allocation3]]
    %v31 = vld [vmem:[%s1] sm:$0xf]
    %v32 = vld [vmem:[%s2] sm:$0xf]
    %v33 = vld [vmem:[%s2 + $0x4] sm:$0xf]
    %v34 = vld [vmem:[%s2 + $0x8] sm:$0xf]
    %v35 = vld [vmem:[%s2 + $0xc] sm:$0xf]
    %v36 = vld [vmem:[%s2 + $0x10] sm:$0xf]
    %v37 = vld [vmem:[%s2 + $0x14] sm:$0xf]
    %v38 = vld [vmem:[%s2 + $0x18] sm:$0xf]
    %v39 = vld [vmem:[%s2 + $0x1c] sm:$0xf]
    %v40 = vld [vmem:[%s2 + $0x20] sm:$0xf]
    %v41 = vld [vmem:[%s2 + $0x24] sm:$0xf]
    %v42 = vld [vmem:[%s2 + $0x28] sm:$0xf]
    %v43 = vld [vmem:[%s2 + $0x2c] sm:$0xf]
    %v44 = vld [vmem:[%s2 + $0x30] sm:$0xf]
    %v45 = vld [vmem:[%s2 + $0x34] sm:$0xf]
    %v46 = vld [vmem:[%s2 + $0x38] sm:$0xf]
    %v47 = vld [vmem:[%s2 + $0x3c] sm:$0xf]
    %v48 = vld [vmem:[%s3] sm:$0x1]
    %v50 = vlaneseq
    %v51 = vshrl.u32 %v50, 7
    %v52 = vsub.s32 0, %v51
    %v53 = vrot.slane %v48, %v52
    %v71 = vunpack.c.l.b16 %v32
    %v72 = vunpack.c.l.b16 %v33
    %v73 = vunpack.c.l.b16 %v34
    %v74 = vunpack.c.l.b16 %v35
    %v75 = vunpack.c.l.b16 %v36
    %v76 = vunpack.c.l.b16 %v37
    %v77 = vunpack.c.l.b16 %v38
    %v78 = vunpack.c.l.b16 %v39
    %v79 = vunpack.c.l.b16 %v40
    %v80 = vunpack.c.l.b16 %v41
    %v81 = vunpack.c.l.b16 %v42
    %v82 = vunpack.c.l.b16 %v43
    %v83 = vunpack.c.l.b16 %v44
    %v84 = vunpack.c.l.b16 %v45
    %v85 = vunpack.c.l.b16 %v46
    %v86 = vunpack.c.l.b16 %v47
    %v87 = vpack.c.b16 %v72, %v71
    %v88 = vpack.c.b16 %v74, %v73
    %v89 = vpack.c.b16 %v76, %v75
    %v90 = vpack.c.b16 %v78, %v77
    %v91 = vpack.c.b16 %v80, %v79
    %v92 = vpack.c.b16 %v82, %v81
    %v93 = vpack.c.b16 %v84, %v83
    %v94 = vpack.c.b16 %v86, %v85
    %103 = vmatprep.subr.bf16.mxu0 0
    %104 = vmatpush1.bf16.msra.mxu0 %v87
    %105 = vmatprep.subr.bf16.mxu0 0
    %106 = vmatpush1.bf16.msra.mxu0 %v88
    %107 = vmatprep.subr.bf16.mxu0 0
    %108 = vmatpush1.bf16.msra.mxu0 %v89
    %109 = vmatprep.subr.bf16.mxu0 0
    %110 = vmatpush1.bf16.msra.mxu0 %v90
    %111 = vmatprep.subr.bf16.mxu0 0
    %112 = vmatpush1.bf16.msra.mxu0 %v91
    %113 = vmatprep.subr.bf16.mxu0 0
    %114 = vmatpush1.bf16.msra.mxu0 %v92
    %115 = vmatprep.subr.bf16.mxu0 0
    %116 = vmatpush1.bf16.msra.mxu0 %v93
    %117 = vmatprep.subr.bf16.mxu0 0
    %118 = vmatpush1.bf16.msra.mxu0 %v94
    %119 = vmatprep.subr.bf16.mxu0 0
    %120 = vmatpush1.bf16.msra.mxu0 0
    %121 = vmatprep.subr.bf16.mxu0 0
    %122 = vmatpush1.bf16.msra.mxu0 0
    %123 = vmatprep.subr.bf16.mxu0 0
    %124 = vmatpush1.bf16.msra.mxu0 0
    %125 = vmatprep.subr.bf16.mxu0 0
    %126 = vmatpush1.bf16.msra.mxu0 0
    %127 = vmatprep.subr.bf16.mxu0 0
    %128 = vmatpush1.bf16.msra.mxu0 0
    %129 = vmatprep.subr.bf16.mxu0 0
    %130 = vmatpush1.bf16.msra.mxu0 0
    %131 = vmatprep.subr.bf16.mxu0 0
    %132 = vmatpush1.bf16.msra.mxu0 0
    %133 = vmatprep.subr.bf16.mxu0 0
    %134 = vmatpush1.bf16.msra.mxu0 0
    %135 = vmatprep.mubr.bf16.mxu0 0
    %136 = vmatmul.mubr.bf16.gmra.mrb[0].mxu0 %v31
    %v137 = vpop.f32.mrb[0].mxu0
    %v138 = vadd.f32 %v53, %v137
    %v139 = vpop.f32.mrb[0].mxu0
    %v140 = vpop.f32.mrb[0].mxu0
    %v141 = vpop.f32.mrb[0].mxu0
    %142 = vdwg.mxu0
    %v143 = vmax.f32 %v138, 0.0
    %v144 = vlaneseq
    %v145 = vshrl.u32 %v144, 7
    %v146 = vlaneseq
    %v147 = vand.u32 %v146, 127
    %v148 = vmul.u32 %v145, 128
    %v149 = vadd.s32 %v148, %v147
    %s150 = smul.u32 0, 2654435769
    %s151 = sadd.s32 %s30, %s150
    %s152 = sadd.s32 %s151, 2246822507
    %v153 = vstv %s152
    %v154 = vadd.s32 %v149, %v153
    %v155 = vshrl.u32 %v154, 16
    %v156 = vxor.u32 %v154, %v155
    %v157 = vmul.u32 %v156, 2146121005
    %v158 = vshrl.u32 %v157, 15
    %v159 = vxor.u32 %v157, %v158
    %v160 = vmul.u32 %v159, 2221713035
    %v161 = vshrl.u32 %v160, 16
    %v162 = vxor.u32 %v160, %v161
    %vm163 = vcmp.lt.u32.totalorder %v162, 2147483648
    %v164 = vsel %vm163, %v143, 0.0
    %v165 = vpack.c.bf16 %v164, %v164
    %v166 = vld [vmem:[%s4] sm:$0xf]
    %v167 = vld [vmem:[%s4 + $0x4] sm:$0xf]
    %v168 = vld [vmem:[%s4 + $0x8] sm:$0xf]
    %v169 = vld [vmem:[%s4 + $0xc] sm:$0xf]
    %v170 = vld [vmem:[%s4 + $0x10] sm:$0xf]
    %v171 = vld [vmem:[%s4 + $0x14] sm:$0xf]
    %v172 = vld [vmem:[%s4 + $0x18] sm:$0xf]
    %v173 = vld [vmem:[%s4 + $0x1c] sm:$0xf]
    %v174 = vld [vmem:[%s4 + $0x20] sm:$0xf]
    %v175 = vld [vmem:[%s4 + $0x24] sm:$0xf]
    %v176 = vld [vmem:[%s4 + $0x28] sm:$0xf]
    %v177 = vld [vmem:[%s4 + $0x2c] sm:$0xf]
    %v178 = vld [vmem:[%s4 + $0x30] sm:$0xf]
    %v179 = vld [vmem:[%s4 + $0x34] sm:$0xf]
    %v180 = vld [vmem:[%s4 + $0x38] sm:$0xf]
    %v181 = vld [vmem:[%s4 + $0x3c] sm:$0xf]
    %v182 = vld [vmem:[%s5] sm:$0x1]
    %v184 = vlaneseq
    %v185 = vshrl.u32 %v184, 7
    %v186 = vsub.s32 0, %v185
    %v187 = vrot.slane %v182, %v186
    %v205 = vunpack.c.l.b16 %v166
    %v206 = vunpack.c.l.b16 %v167
    %v207 = vunpack.c.l.b16 %v168
    %v208 = vunpack.c.l.b16 %v169
    %v209 = vunpack.c.l.b16 %v170
    %v210 = vunpack.c.l.b16 %v171
    %v211 = vunpack.c.l.b16 %v172
    %v212 = vunpack.c.l.b16 %v173
    %v213 = vunpack.c.l.b16 %v174
    %v214 = vunpack.c.l.b16 %v175
    %v215 = vunpack.c.l.b16 %v176
    %v216 = vunpack.c.l.b16 %v177
    %v217 = vunpack.c.l.b16 %v178
    %v218 = vunpack.c.l.b16 %v179
    %v219 = vunpack.c.l.b16 %v180
    %v220 = vunpack.c.l.b16 %v181
    %v221 = vpack.c.b16 %v206, %v205
    %v222 = vpack.c.b16 %v208, %v207
    %v223 = vpack.c.b16 %v210, %v209
    %v224 = vpack.c.b16 %v212, %v211
    %v225 = vpack.c.b16 %v214, %v213
    %v226 = vpack.c.b16 %v216, %v215
    %v227 = vpack.c.b16 %v218, %v217
    %v228 = vpack.c.b16 %v220, %v219
    %237 = vmatprep.subr.bf16.mxu0 0
    %238 = vmatpush1.bf16.msra.mxu0 %v221
    %239 = vmatprep.subr.bf16.mxu0 0
    %240 = vmatpush1.bf16.msra.mxu0 %v222
    %241 = vmatprep.subr.bf16.mxu0 0
    %242 = vmatpush1.bf16.msra.mxu0 %v223
    %243 = vmatprep.subr.bf16.mxu0 0
    %244 = vmatpush1.bf16.msra.mxu0 %v224
    %245 = vmatprep.subr.bf16.mxu0 0
    %246 = vmatpush1.bf16.msra.mxu0 %v225
    %247 = vmatprep.subr.bf16.mxu0 0
    %248 = vmatpush1.bf16.msra.mxu0 %v226
    %249 = vmatprep.subr.bf16.mxu0 0
    %250 = vmatpush1.bf16.msra.mxu0 %v227
    %251 = vmatprep.subr.bf16.mxu0 0
    %252 = vmatpush1.bf16.msra.mxu0 %v228
    %253 = vmatprep.subr.bf16.mxu0 0
    %254 = vmatpush1.bf16.msra.mxu0 0
    %255 = vmatprep.subr.bf16.mxu0 0
    %256 = vmatpush1.bf16.msra.mxu0 0
    %257 = vmatprep.subr.bf16.mxu0 0
    %258 = vmatpush1.bf16.msra.mxu0 0
    %259 = vmatprep.subr.bf16.mxu0 0
    %260 = vmatpush1.bf16.msra.mxu0 0
    %261 = vmatprep.subr.bf16.mxu0 0
    %262 = vmatpush1.bf16.msra.mxu0 0
    %263 = vmatprep.subr.bf16.mxu0 0
    %264 = vmatpush1.bf16.msra.mxu0 0
    %265 = vmatprep.subr.bf16.mxu0 0
    %266 = vmatpush1.bf16.msra.mxu0 0
    %267 = vmatprep.subr.bf16.mxu0 0
    %268 = vmatpush1.bf16.msra.mxu0 0
    %269 = vmatprep.mubr.bf16.mxu0 0
    %270 = vmatmul.mubr.bf16.gmra.mrb[0].mxu0 %v165
    %v271 = vpop.f32.mrb[0].mxu0
    %v272 = vadd.f32 %v187, %v271
    %v273 = vpop.f32.mrb[0].mxu0
    %v274 = vpop.f32.mrb[0].mxu0
    %v275 = vpop.f32.mrb[0].mxu0
    %276 = vdwg.mxu0
    %v277 = vmax.f32 %v272, 0.0
    %s278 = sadd.s32 %s151, 198677718
    %v279 = vstv %s278
    %v280 = vadd.s32 %v149, %v279
    %v281 = vshrl.u32 %v280, 16
    %v282 = vxor.u32 %v280, %v281
    %v283 = vmul.u32 %v282, 2146121005
    %v284 = vshrl.u32 %v283, 15
    %v285 = vxor.u32 %v283, %v284
    %v286 = vmul.u32 %v285, 2221713035
    %v287 = vshrl.u32 %v286, 16
    %v288 = vxor.u32 %v286, %v287
    %vm289 = vcmp.lt.u32.totalorder %v288, 2147483648
    %v290 = vsel %vm289, %v277, 0.0
    %v291 = vpack.c.bf16 %v290, %v290
    %v292 = vld [vmem:[%s6] sm:$0xf]
    %v293 = vld [vmem:[%s6 + $0x4] sm:$0xf]
    %v294 = vld [vmem:[%s6 + $0x8] sm:$0xf]
    %v295 = vld [vmem:[%s6 + $0xc] sm:$0xf]
    %v296 = vld [vmem:[%s6 + $0x10] sm:$0xf]
    %v297 = vld [vmem:[%s6 + $0x14] sm:$0xf]
    %v298 = vld [vmem:[%s6 + $0x18] sm:$0xf]
    %v299 = vld [vmem:[%s6 + $0x1c] sm:$0xf]
    %v300 = vld [vmem:[%s6 + $0x20] sm:$0xf]
    %v301 = vld [vmem:[%s6 + $0x24] sm:$0xf]
    %v302 = vld [vmem:[%s6 + $0x28] sm:$0xf]
    %v303 = vld [vmem:[%s6 + $0x2c] sm:$0xf]
    %v304 = vld [vmem:[%s6 + $0x30] sm:$0xf]
    %v305 = vld [vmem:[%s6 + $0x34] sm:$0xf]
    %v306 = vld [vmem:[%s6 + $0x38] sm:$0xf]
    %v307 = vld [vmem:[%s6 + $0x3c] sm:$0xf]
    %v308 = vld [vmem:[%s7] sm:$0x1]
    %v310 = vlaneseq
    %v311 = vshrl.u32 %v310, 7
    %v312 = vsub.s32 0, %v311
    %v313 = vrot.slane %v308, %v312
    %v331 = vunpack.c.l.b16 %v292
    %v332 = vunpack.c.l.b16 %v293
    %v333 = vunpack.c.l.b16 %v294
    %v334 = vunpack.c.l.b16 %v295
    %v335 = vunpack.c.l.b16 %v296
    %v336 = vunpack.c.l.b16 %v297
    %v337 = vunpack.c.l.b16 %v298
    %v338 = vunpack.c.l.b16 %v299
    %v339 = vunpack.c.l.b16 %v300
    %v340 = vunpack.c.l.b16 %v301
    %v341 = vunpack.c.l.b16 %v302
    %v342 = vunpack.c.l.b16 %v303
    %v343 = vunpack.c.l.b16 %v304
    %v344 = vunpack.c.l.b16 %v305
    %v345 = vunpack.c.l.b16 %v306
    %v346 = vunpack.c.l.b16 %v307
    %v347 = vpack.c.b16 %v332, %v331
    %v348 = vpack.c.b16 %v334, %v333
    %v349 = vpack.c.b16 %v336, %v335
    %v350 = vpack.c.b16 %v338, %v337
    %v351 = vpack.c.b16 %v340, %v339
    %v352 = vpack.c.b16 %v342, %v341
    %v353 = vpack.c.b16 %v344, %v343
    %v354 = vpack.c.b16 %v346, %v345
    %363 = vmatprep.subr.bf16.mxu0 0
    %364 = vmatpush1.bf16.msra.mxu0 %v347
    %365 = vmatprep.subr.bf16.mxu0 0
    %366 = vmatpush1.bf16.msra.mxu0 %v348
    %367 = vmatprep.subr.bf16.mxu0 0
    %368 = vmatpush1.bf16.msra.mxu0 %v349
    %369 = vmatprep.subr.bf16.mxu0 0
    %370 = vmatpush1.bf16.msra.mxu0 %v350
    %371 = vmatprep.subr.bf16.mxu0 0
    %372 = vmatpush1.bf16.msra.mxu0 %v351
    %373 = vmatprep.subr.bf16.mxu0 0
    %374 = vmatpush1.bf16.msra.mxu0 %v352
    %375 = vmatprep.subr.bf16.mxu0 0
    %376 = vmatpush1.bf16.msra.mxu0 %v353
    %377 = vmatprep.subr.bf16.mxu0 0
    %378 = vmatpush1.bf16.msra.mxu0 %v354
    %379 = vmatprep.subr.bf16.mxu0 0
    %380 = vmatpush1.bf16.msra.mxu0 0
    %381 = vmatprep.subr.bf16.mxu0 0
    %382 = vmatpush1.bf16.msra.mxu0 0
    %383 = vmatprep.subr.bf16.mxu0 0
    %384 = vmatpush1.bf16.msra.mxu0 0
    %385 = vmatprep.subr.bf16.mxu0 0
    %386 = vmatpush1.bf16.msra.mxu0 0
    %387 = vmatprep.subr.bf16.mxu0 0
    %388 = vmatpush1.bf16.msra.mxu0 0
    %389 = vmatprep.subr.bf16.mxu0 0
    %390 = vmatpush1.bf16.msra.mxu0 0
    %391 = vmatprep.subr.bf16.mxu0 0
    %392 = vmatpush1.bf16.msra.mxu0 0
    %393 = vmatprep.subr.bf16.mxu0 0
    %394 = vmatpush1.bf16.msra.mxu0 0
    %395 = vmatprep.mubr.bf16.mxu0 0
    %396 = vmatmul.mubr.bf16.gmra.mrb[0].mxu0 %v291
    %v397 = vpop.f32.mrb[0].mxu0
    %v398 = vadd.f32 %v313, %v397
    %v399 = vpop.f32.mrb[0].mxu0
    %v400 = vpop.f32.mrb[0].mxu0
    %v401 = vpop.f32.mrb[0].mxu0
    %402 = vdwg.mxu0
    %v403 = vxor.u32 %v398, 2147483648
    %v404 = vmul.f32 %v403, 1.442695
    %v405 = vpow.pop %v404
    %v406 = vadd.f32 %v405, 1.0
    %v407 = vrcp.pop %v406
    %v408 = vmul.f32 1.0, %v407
    %409 = vst [vmem:[#allocation4] sm:$0xff] %v408
    // Predicated region
    $region30: #{mlp_forward.1} parent=1 // pred_check
      _
    $region31: #{mlp_forward.1} parent=1 // pred_check_branch
      %411 = sbr.rel (0) target = $region33
    $region32: #{mlp_forward.1} parent=1 // pred_region
      %s413 = ssub.s32 128, 128
      %414 = vsyncadd [#allocation5], %s413
      %s416 = sshll.u32 [#allocation4], 4
      %s417 = int_to_ptr.vmem [resolvable:$true] %s416
      %419 = dma.vmem_to_hbm [thread:$0]  %s417, 128, %s8, [#allocation5]
    $region33: #{mlp_forward.1} parent=1 // pred_fallthru
      _
    // Predicated region
    $region34: #{mlp_forward.1} parent=1 // pred_check
      _
    $region35: #{mlp_forward.1} parent=1 // pred_check_branch
      %421 = sbr.rel (0) target = $region37
    $region36: #{mlp_forward.1} parent=1 // pred_region
      %422 = dma.done [#allocation5], 128
    $region37: #{mlp_forward.1} parent=1 // pred_fallthru
      _
    %423 = vsyncpa [#allocation5], 1

</llo_original>
